<compile_context>
chip_gen: v7x
topology: tpu7x:2x2x1
jax: 0.10.0
libtpu: 0.0.40
codegen_flags: <defaults>
</compile_context>

<pallas_src>
import jax
import jax.numpy as jnp
from jax import lax
from jax.experimental import pallas as pl
from jax.experimental.pallas import tpu as pltpu


# ----------------------------- helpers --------------------------------------

def _round_up(x, m):
    return ((x + m - 1) // m) * m


def _choose_row_tile(m, target=512, min_tile=128):
    """Largest row tile <= target that still yields >= 2 grid blocks (keeps
    both v7x TensorCores busy on the parallel M axis); never below min_tile."""
    t = target
    while t > min_tile and _round_up(m, t) < 2 * t:
        t //= 2
    return t


# ----------------------------- Pallas kernels -------------------------------

def _conv_stats_kernel(a_ref, b_ref, o_ref, stats_ref):
    """One (tm, Np) tile of the im2col matmul with BN partial stats fused into
    the epilogue.

    a_ref:     (tm, Kp) bf16  im2col patches
    b_ref:     (Kp, Np) bf16  reshaped conv weights
    o_ref:     (tm, Np) bf16  conv output tile
    stats_ref: (8,  Np) f32   row0 = column sum, row1 = column sum-of-squares
    """
    acc = jnp.dot(a_ref[...], b_ref[...], preferred_element_type=jnp.float32)
    o_ref[...] = acc.astype(o_ref.dtype)
    # Sublane reductions run on the XLU slot -> essentially free next to MXU.
    s = jnp.sum(acc, axis=0, keepdims=True)          # (1, Np)
    sq = jnp.sum(acc * acc, axis=0, keepdims=True)   # (1, Np)
    row = lax.broadcasted_iota(jnp.int32, (8, acc.shape[1]), 0)
    stats_ref[...] = jnp.where(row == 0, s, jnp.where(row == 1, sq, 0.0))


def _bn_relu_kernel(x_ref, scale_ref, shift_ref, o_ref):
    """y = relu(x * scale + shift); math in f32 (v5e-safe), store in bf16."""
    x = x_ref[...].astype(jnp.float32)
    y = jnp.maximum(x * scale_ref[...] + shift_ref[...], 0.0)
    o_ref[...] = y.astype(o_ref.dtype)


# ----------------------------- Pallas wrappers ------------------------------

def pallas_conv_matmul_stats(a, b, tm):
    """a: [Mp, Kp] bf16, b: [Kp, Np] bf16 (both pre-padded).

    Returns (conv bf16 [Mp, Np], stats f32 [grid_m*8, Np]) where for block i
    stats[8*i + 0] is the column sum and stats[8*i + 1] the column sum-of-sq.
    """
    mp, kp = a.shape
    _, np_ = b.shape
    grid_m = mp // tm
    flops = 2 * mp * kp * np_
    bytes_accessed = (mp * kp + kp * np_ + mp * np_) * 2 + grid_m * 8 * np_ * 4
    return pl.pallas_call(
        _conv_stats_kernel,
        out_shape=(jax.ShapeDtypeStruct((mp, np_), jnp.bfloat16),
                   jax.ShapeDtypeStruct((grid_m * 8, np_), jnp.float32)),
        grid_spec=pltpu.PrefetchScalarGridSpec(
            num_scalar_prefetch=0,
            grid=(grid_m,),
            in_specs=[
                pl.BlockSpec((tm, kp), lambda i: (i, 0)),
                pl.BlockSpec((kp, np_), lambda i: (0, 0)),
            ],
            out_specs=(pl.BlockSpec((tm, np_), lambda i: (i, 0)),
                       pl.BlockSpec((8, np_), lambda i: (i, 0))),
        ),
        compiler_params=pltpu.CompilerParams(
            dimension_semantics=("parallel",),
            vmem_limit_bytes=48 * 1024 * 1024),
        cost_estimate=pl.CostEstimate(flops=flops, transcendentals=0,
                                      bytes_accessed=bytes_accessed),
    )(a, b)


def pallas_bn_relu(x_p, scale, shift, tm):
    """x_p: [Mp, Np] bf16; scale/shift: [1, Np] f32 -> bf16 relu(x*scale+shift)."""
    mp, np_ = x_p.shape
    return pl.pallas_call(
        _bn_relu_kernel,
        out_shape=jax.ShapeDtypeStruct((mp, np_), jnp.bfloat16),
        grid_spec=pltpu.PrefetchScalarGridSpec(
            num_scalar_prefetch=0,
            grid=(mp // tm,),
            in_specs=[
                pl.BlockSpec((tm, np_), lambda i: (i, 0)),
                pl.BlockSpec((1, np_), lambda i: (0, 0)),
                pl.BlockSpec((1, np_), lambda i: (0, 0)),
            ],
            out_specs=pl.BlockSpec((tm, np_), lambda i: (i, 0)),
        ),
        compiler_params=pltpu.CompilerParams(
            dimension_semantics=("parallel",)),
    )(x_p, scale, shift)


# ------------------------------ glue (plain JAX) -----------------------------

def _im2col(x_nhwc, k, stride):
    """x: [N, H, W, C] (already spatially padded) -> [N*Ho*Wo, k*k*C]."""
    n, h, w, c = x_nhwc.shape
    ho = (h - k) // stride + 1
    wo = (w - k) // stride + 1
    cols = []
    for i in range(k):
        for j in range(k):
            cols.append(
                x_nhwc[:, i:i + ho * stride:stride, j:j + wo * stride:stride, :])
    patches = jnp.stack(cols, axis=3)            # [N, Ho, Wo, k*k, C]
    return patches.reshape(n * ho * wo, k * k * c), (n, ho, wo)


def _conv_bn_relu(x_nhwc, weight_hwio, gamma, beta, *, kernel, stride,
                  pad, pad_mode, eps=1e-5):
    """One encoder block: pad -> conv (Pallas matmul + fused BN stats) ->
    BN(train) affine + ReLU (Pallas elementwise)."""
    k = kernel
    c_out = weight_hwio.shape[-1]
    x_pad = jnp.pad(x_nhwc, ((0, 0), (pad, pad), (pad, pad), (0, 0)),
                    mode=pad_mode)
    # TODO(synk): for large spatial sizes, fold the (ki, kj) taps into the
    # matmul reduction axis (Element-offset BlockSpecs / manual DMA on the
    # padded NHWC input) instead of materializing the k*k-expanded im2col
    # buffer in HBM.
    patches, (n, ho, wo) = _im2col(x_pad, k, stride)
    m, kk = patches.shape

    tm = _choose_row_tile(m)
    mp = _round_up(m, tm)
    kp = _round_up(kk, 128)
    np_ = _round_up(c_out, 128)

    a = jnp.pad(patches.astype(jnp.bfloat16), ((0, mp - m), (0, kp - kk)))
    w2d = weight_hwio.reshape(kk, c_out)
    b = jnp.pad(w2d.astype(jnp.bfloat16), ((0, kp - kk), (0, np_ - c_out)))

    conv_p, stats = pallas_conv_matmul_stats(a, b, tm)

    # BatchNorm (training mode): batch statistics over rows (== N, H, W).
    # Padded rows/channels are exact zeros (bias-free conv, zero padding), so
    # they do not pollute the sums.
    st = stats.reshape(-1, 8, np_)
    col_sum = jnp.sum(st[:, 0, :c_out], axis=0)
    col_sq = jnp.sum(st[:, 1, :c_out], axis=0)
    mean = col_sum / m
    # biased variance (PyTorch training-mode forward); clamp guards tiny
    # negative values from E[x^2] - mean^2 cancellation.
    var = jnp.maximum(col_sq / m - mean * mean, 0.0)
    inv_std = lax.rsqrt(var + eps)
    scale = gamma * inv_std
    shift = beta - mean * scale
    scale_p = jnp.pad(scale, (0, np_ - c_out)).reshape(1, np_).astype(jnp.float32)
    shift_p = jnp.pad(shift, (0, np_ - c_out)).reshape(1, np_).astype(jnp.float32)

    out_p = pallas_bn_relu(conv_p, scale_p, shift_p, tm)
    return out_p[:m, :c_out].reshape(n, ho, wo, c_out)


def init_params(key, in_channel, hidden):
    ks = jax.random.split(key, 3)
    scale = 0.05
    return {
        # HWIO conv weights; bias-free (BatchNorm => use_bias=False)
        "w1": scale * jax.random.normal(ks[0], (7, 7, in_channel, hidden), jnp.float32),
        "w2": scale * jax.random.normal(ks[1], (3, 3, hidden, 2 * hidden), jnp.float32),
        "w3": scale * jax.random.normal(ks[2], (3, 3, 2 * hidden, 4 * hidden), jnp.float32),
        # BatchNorm affine params (PyTorch default init: gamma=1, beta=0)
        "g1": jnp.ones((hidden,), jnp.float32), "b1": jnp.zeros((hidden,), jnp.float32),
        "g2": jnp.ones((2 * hidden,), jnp.float32), "b2": jnp.zeros((2 * hidden,), jnp.float32),
        "g3": jnp.ones((4 * hidden,), jnp.float32), "b3": jnp.zeros((4 * hidden,), jnp.float32),
    }


def patn_encoder_forward(x_nchw, params):
    # layout: PyTorch NCHW -> NHWC (bf16) for the kernels, back to NCHW f32.
    x = jnp.transpose(x_nchw, (0, 2, 3, 1)).astype(jnp.bfloat16)

    # Block 1: ReflectionPad2d(3) + Conv 7x7 s1 + BN + ReLU
    x = _conv_bn_relu(x, params["w1"], params["g1"], params["b1"],
                      kernel=7, stride=1, pad=3, pad_mode="reflect")
    # Block 2: Conv 3x3 s2 p1 (zero pad) + BN + ReLU
    x = _conv_bn_relu(x, params["w2"], params["g2"], params["b2"],
                      kernel=3, stride=2, pad=1, pad_mode="constant")
    # Block 3: Conv 3x3 s2 p1 (zero pad) + BN + ReLU
    x = _conv_bn_relu(x, params["w3"], params["g3"], params["b3"],
                      kernel=3, stride=2, pad=1, pad_mode="constant")

    return jnp.transpose(x, (0, 3, 1, 2)).astype(jnp.float32)


if __name__ == "__main__":
    key = jax.random.PRNGKey(0)
    batch, in_channel, hidden, spatial = 2, 4, 32, 16

    k_x, k_p = jax.random.split(key)
    x = jax.random.normal(k_x, (batch, in_channel, spatial, spatial), jnp.float32)
    params = init_params(k_p, in_channel, hidden)

    out = patn_encoder_forward(x, params)
    out = jax.block_until_ready(out)

    expected_shape = (batch, 4 * hidden, spatial // 4, spatial // 4)
    assert out.shape == expected_shape, (out.shape, expected_shape)
    assert out.dtype == jnp.float32
    assert bool(jnp.all(jnp.isfinite(out)))
    print("KERNEL_OK")
</pallas_src>

<mosaic_0001>
module attributes {stable_mosaic.version = 11 : i64} {
  func.func @_conv_stats_kernel(%arg0: i32, %arg1: memref<256x256xbf16, #tpu.memory_space<vmem>>, %arg2: memref<256x128xbf16, #tpu.memory_space<vmem>>, %arg3: memref<256x128xbf16, #tpu.memory_space<vmem>>, %arg4: memref<8x128xf32, #tpu.memory_space<vmem>>) attributes {dimension_semantics = [#tpu.dimension_semantics<parallel>], iteration_bounds = array<i64: 2>, scalar_prefetch = 0 : i64, scratch_operands = 0 : i64, tpu.core_type = #tpu.core_type<tc>, window_params = [{transform_indices = @transform_0, window_bounds = array<i64: 256, 256>}, {pipeline_mode = #tpu.pipeline_mode<synchronous>, transform_indices = @transform_1, window_bounds = array<i64: 256, 128>}, {transform_indices = @transform_2, window_bounds = array<i64: 256, 128>}, {transform_indices = @transform_3, window_bounds = array<i64: 8, 128>}]} {
    %c0 = arith.constant 0 : index
    %c0_0 = arith.constant 0 : index
    %0 = vector.load %arg1[%c0, %c0_0] : memref<256x256xbf16, #tpu.memory_space<vmem>>, vector<256x256xbf16>
    %c0_1 = arith.constant 0 : index
    %c0_2 = arith.constant 0 : index
    %1 = vector.load %arg2[%c0_1, %c0_2] : memref<256x128xbf16, #tpu.memory_space<vmem>>, vector<256x128xbf16>
    %cst = arith.constant dense<0.000000e+00> : vector<256x128xf32>
    %2 = tpu.matmul %0, %1, %cst {dimension_numbers = #tpu.dot_dimension_numbers<[1], [0], [0], [1], [0, 0, 1, 1], [], []>} : vector<256x256xbf16>, vector<256x128xbf16>, vector<256x128xf32> -> vector<256x128xf32>
    %3 = arith.truncf %2 : vector<256x128xf32> to vector<256x128xbf16>
    %c0_3 = arith.constant 0 : index
    %c0_4 = arith.constant 0 : index
    %4 = vector.load %arg3[%c0_3, %c0_4] : memref<256x128xbf16, #tpu.memory_space<vmem>>, vector<256x128xbf16>
    tpu.vector_store %arg3[%c0_3, %c0_4], %3 {strides = array<i32>} : memref<256x128xbf16, #tpu.memory_space<vmem>>, vector<256x128xbf16>,
    %cst_5 = arith.constant dense<0.000000e+00> : vector<128xf32>
    %5 = vector.multi_reduction <add>, %2, %cst_5 [0] : vector<256x128xf32> to vector<128xf32>
    %6 = vector.shape_cast %5 : vector<128xf32> to vector<1x128xf32>
    %7 = arith.mulf %2, %2 : vector<256x128xf32>
    %cst_6 = arith.constant dense<0.000000e+00> : vector<128xf32>
    %8 = vector.multi_reduction <add>, %7, %cst_6 [0] : vector<256x128xf32> to vector<128xf32>
    %9 = vector.shape_cast %8 : vector<128xf32> to vector<1x128xf32>
    %10 = tpu.iota {dimensions = array<i32: 0>} : vector<8x128xi32>
    %c0_i32 = arith.constant 0 : i32
    %11 = vector.broadcast %c0_i32 : i32 to vector<8x128xi32>
    %12 = arith.cmpi eq, %10, %11 : vector<8x128xi32>
    %c1_i32 = arith.constant 1 : i32
    %13 = vector.broadcast %c1_i32 : i32 to vector<8x128xi32>
    %14 = arith.cmpi eq, %10, %13 : vector<8x128xi32>
    %cst_7 = arith.constant 0.000000e+00 : f32
    %15 = vector.shape_cast %9 : vector<1x128xf32> to vector<1x128xf32>
    %16 = vector.broadcast %15 : vector<1x128xf32> to vector<8x128xf32>
    %17 = vector.broadcast %cst_7 : f32 to vector<8x128xf32>
    %18 = arith.select %14, %16, %17 : vector<8x128xi1>, vector<8x128xf32>
    %19 = vector.shape_cast %6 : vector<1x128xf32> to vector<1x128xf32>
    %20 = vector.broadcast %19 : vector<1x128xf32> to vector<8x128xf32>
    %21 = arith.select %12, %20, %18 : vector<8x128xi1>, vector<8x128xf32>
    %c0_8 = arith.constant 0 : index
    %c0_9 = arith.constant 0 : index
    %22 = vector.load %arg4[%c0_8, %c0_9] : memref<8x128xf32, #tpu.memory_space<vmem>>, vector<8x128xf32>
    tpu.vector_store %arg4[%c0_8, %c0_9], %21 {strides = array<i32>} : memref<8x128xf32, #tpu.memory_space<vmem>>, vector<8x128xf32>,
    return
  }
  func.func @transform_0(%arg0: i32) -> (i32, i32) {
    %c0_i32 = arith.constant 0 : i32
    %c0_i32_0 = arith.constant 0 : i32
    return %arg0, %c0_i32 : i32, i32
  }
  func.func @transform_1(%arg0: i32) -> (i32, i32) {
    %c0_i32 = arith.constant 0 : i32
    %c0_i32_0 = arith.constant 0 : i32
    %c0_i32_1 = arith.constant 0 : i32
    return %c0_i32, %c0_i32_0 : i32, i32
  }
  func.func @transform_2(%arg0: i32) -> (i32, i32) {
    %c0_i32 = arith.constant 0 : i32
    %c0_i32_0 = arith.constant 0 : i32
    return %arg0, %c0_i32 : i32, i32
  }
  func.func @transform_3(%arg0: i32) -> (i32, i32) {
    %c0_i32 = arith.constant 0 : i32
    %c0_i32_0 = arith.constant 0 : i32
    return %arg0, %c0_i32 : i32, i32
  }
}

</mosaic_0001>

<llo_original>
// kernel: tpu_custom_call.1
$region0: #{tpu_custom_call.1}
  #allocation0 [shape = 'u32[]', space=smem, size = 0x4, offset = 0x4, fixed_abs, tag = 'smem constant byte address 0x4 - core index']
  #allocation1 [shape = 'u32[144,128]{1,0:T(1,128)}', space=vmem, size = 0x12000, scoped, tag = 'internal scratch']
  %s0 = inlined_call_operand.hbm [shape: bf16[512,256], index: 0, kind: input, shape index: {}]
  %s1 = inlined_call_operand.hbm [shape: bf16[256,128], index: 1, kind: input, shape index: {}]
  %s2 = inlined_call_operand.hbm [shape: bf16[512,128], index: 2, kind: output, shape index: {0}]
  %s3 = inlined_call_operand.hbm [shape: f32[16,128], index: 3, kind: output, shape index: {1}]
  %4 = xla_tuple %s2, %s3
  %s5 = sld [smem:[#allocation0]]
  $region57: #{tpu_custom_call.1} parent=0
    _
  %s7 = ssub.s32 1, %s5
  %s8 = scalar_select 0, %s7, %s5
  $region1: #{tpu_custom_call.1} parent=0
    #allocation2 [shape = 'u8[262144]{0}', space=vmem, size = 0x40000, scoped, tag = 'input window, operand 0']
    #allocation3 [shape = 's32[2]{0}', space=sflag, size = 0x8, scoped, tag = 'scoped memory for tpu_custom_call.1']
    #allocation4 [shape = 's32[2]{0}', space=sflag, size = 0x8, scoped, tag = 'scoped memory for tpu_custom_call.1']
    #allocation5 [shape = 'u8[65536]{0}', space=vmem, size = 0x10000, scoped, tag = 'input window, operand 1, single buffered']
    #allocation6 [shape = 's32[1]{0}', space=sflag, size = 0x4, scoped, tag = 'scoped memory for tpu_custom_call.1']
    #allocation7 [shape = 'u8[131072]{0}', space=vmem, size = 0x20000, scoped, tag = 'output window, operand 0']
    #allocation8 [shape = 'u8[8192]{0}', space=vmem, size = 0x2000, scoped, tag = 'output window, operand 1']
    #allocation9 [shape = 's32[2]{0}', space=sflag, size = 0x8, scoped, tag = 'scoped memory for tpu_custom_call.1']
    %9 = vsyncpa [#allocation3], 0
    %s10 = scalar_lea.sflag [#allocation3], 1
    %11 = vsyncpa %s10, 0
    %12 = vsyncpa [#allocation6], 0
    %13 = vsyncpa [#allocation4], 0
    %s14 = scalar_lea.sflag [#allocation4], 1
    %15 = vsyncpa %s14, 0
    %16 = vsyncpa [#allocation9], 0
    %s17 = scalar_lea.sflag [#allocation9], 1
    %18 = vsyncpa %s17, 0
    loop: start=0, step=1, limit=4
    $region2: #{tpu_custom_call.1} parent=1 // loop_pre_header
      _
    $region3: #{tpu_custom_call.1} parent=1 // loop_header
      %s20 = sphi 0, %s24
      %p21 = scmp.ge.s32.totalorder %s20, 4
      %s30 = sphi 0, %s32
      %s33 = sphi 0, %s30
      %s34 = sphi 0, %s33
      %s50 = sphi 0, %s34
      %s54 = sphi 0, %s54
      %s56 = sphi 0, %s54
      %s57 = sphi 0, %s56
      %s71 = sphi 0, %s57
      %s77 = sphi 0, %s79
      %s80 = sphi 0, %s77
      %s81 = sphi 0, %s80
      %s97 = sphi 0, %s81
      %s103 = sphi 0, %s105
      %s106 = sphi 0, %s103
      %s107 = sphi 0, %s106
      %s123 = sphi 0, %s107
    $region4: #{tpu_custom_call.1} parent=1 // loop_header_branch
      %23 = sbr.rel (%p21) target = $region8
    $region5: #{tpu_custom_call.1} parent=1 // loop_body
      %s25 = ssub.s32 %s20, 1
      %s26 = ssub.s32 %s20, 2
      %s27 = sadd.s32 %s20, 1
      %s28 = ssub.s32 %s20, %s27
      %p29 = scmp.eq.s32.totalorder %s28, 0
      %s31 = sadd.s32 %s30, 1
      %s32 = scalar_select %p29, %s30, %s31
      %p35 = pneg %p29
      %p36 = scmp.eq.s32.totalorder %s20, 1
      %p37 = por %p35, %p36
      %p38 = scmp.ne.s32.totalorder %s30, %s33
      %p39 = scmp.eq.s32.totalorder %s20, 0
      %p40 = por %p38, %p39
      %p41 = scmp.ne.s32.totalorder %s30, %s33
      %p42 = scmp.eq.s32.totalorder %s25, 1
      %p43 = por %p41, %p42
      %p44 = scmp.ne.s32.totalorder %s33, %s34
      %p45 = scmp.eq.s32.totalorder %s25, 0
      %p46 = por %p44, %p45
      %p47 = scmp.ne.s32.totalorder %s33, %s34
      %p48 = scmp.eq.s32.totalorder %s26, 1
      %p49 = por %p47, %p48
      %p51 = scmp.ne.s32.totalorder %s34, %s50
      %p52 = scmp.eq.s32.totalorder %s26, 0
      %p53 = por %p51, %p52
      %s55 = sadd.s32 %s54, 1
      %p58 = scmp.eq.s32.totalorder %s20, 1
      %p59 = scmp.ne.s32.totalorder %s54, %s56
      %p60 = scmp.eq.s32.totalorder %s20, 0
      %p61 = por %p59, %p60
      %p62 = scmp.ne.s32.totalorder %s54, %s56
      %p63 = scmp.eq.s32.totalorder %s25, 1
      %p64 = por %p62, %p63
      %p65 = scmp.ne.s32.totalorder %s56, %s57
      %p66 = scmp.eq.s32.totalorder %s25, 0
      %p67 = por %p65, %p66
      %p68 = scmp.ne.s32.totalorder %s56, %s57
      %p69 = scmp.eq.s32.totalorder %s26, 1
      %p70 = por %p68, %p69
      %p72 = scmp.ne.s32.totalorder %s57, %s71
      %p73 = scmp.eq.s32.totalorder %s26, 0
      %p74 = por %p72, %p73
      %s75 = ssub.s32 %s20, %s27
      %p76 = scmp.eq.s32.totalorder %s75, 0
      %s78 = sadd.s32 %s77, 1
      %s79 = scalar_select %p76, %s77, %s78
      %p82 = pneg %p76
      %p83 = scmp.eq.s32.totalorder %s20, 1
      %p84 = por %p82, %p83
      %p85 = scmp.ne.s32.totalorder %s77, %s80
      %p86 = scmp.eq.s32.totalorder %s20, 0
      %p87 = por %p85, %p86
      %p88 = scmp.ne.s32.totalorder %s77, %s80
      %p89 = scmp.eq.s32.totalorder %s25, 1
      %p90 = por %p88, %p89
      %p91 = scmp.ne.s32.totalorder %s80, %s81
      %p92 = scmp.eq.s32.totalorder %s25, 0
      %p93 = por %p91, %p92
      %p94 = scmp.ne.s32.totalorder %s80, %s81
      %p95 = scmp.eq.s32.totalorder %s26, 1
      %p96 = por %p94, %p95
      %p98 = scmp.ne.s32.totalorder %s81, %s97
      %p99 = scmp.eq.s32.totalorder %s26, 0
      %p100 = por %p98, %p99
      %s101 = ssub.s32 %s20, %s27
      %p102 = scmp.eq.s32.totalorder %s101, 0
      %s104 = sadd.s32 %s103, 1
      %s105 = scalar_select %p102, %s103, %s104
      %p108 = pneg %p102
      %p109 = scmp.eq.s32.totalorder %s20, 1
      %p110 = por %p108, %p109
      %p111 = scmp.ne.s32.totalorder %s103, %s106
      %p112 = scmp.eq.s32.totalorder %s20, 0
      %p113 = por %p111, %p112
      %p114 = scmp.ne.s32.totalorder %s103, %s106
      %p115 = scmp.eq.s32.totalorder %s25, 1
      %p116 = por %p114, %p115
      %p117 = scmp.ne.s32.totalorder %s106, %s107
      %p118 = scmp.eq.s32.totalorder %s25, 0
      %p119 = por %p117, %p118
      %p120 = scmp.ne.s32.totalorder %s106, %s107
      %p121 = scmp.eq.s32.totalorder %s26, 1
      %p122 = por %p120, %p121
      %p124 = scmp.ne.s32.totalorder %s107, %s123
      %p125 = scmp.eq.s32.totalorder %s26, 0
      %p126 = por %p124, %p125
      %p127 = scmp.le.s32.totalorder 1, %s20
      %p128 = scmp.lt.s32.totalorder %s20, 3
      %p129 = pnand %p127, %p128
      %p130 = pneg %p129
      // Predicated region
      $region9: #{tpu_custom_call.1} parent=5 // pred_check
        _
      $region10: #{tpu_custom_call.1} parent=5 // pred_check_branch
        %132 = sbr.rel (%p129) target = $region12
      $region11: #{tpu_custom_call.1} parent=5 // pred_region
        %s133 = ssub.s32 %s20, 1
        // Predicated region
        $region13: #{tpu_custom_call.1} parent=11 // pred_check
          %p134 = pneg %p67
        $region14: #{tpu_custom_call.1} parent=11 // pred_check_branch
          %136 = sbr.rel (%p134) target = $region16
        $region15: #{tpu_custom_call.1} parent=11 // pred_region
          %s138 = ssub.s32 2048, 2048
          %139 = vsyncadd [#allocation6], %s138
          %s140 = sshll.u32 [#allocation5], 4
          %s141 = int_to_ptr.vmem [resolvable:$true] %s140
          %146 = dma.hbm_to_vmem [thread:$0]  %s1, 2048, %s141, [#allocation6], 64, 64, 4
        $region16: #{tpu_custom_call.1} parent=11 // pred_fallthru
          _
      $region12: #{tpu_custom_call.1} parent=5 // pred_fallthru
        _
      %p147 = scmp.lt.s32.totalorder %s20, 2
      // Predicated region
      $region17: #{tpu_custom_call.1} parent=5 // pred_check
        %p148 = pneg %p147
      $region18: #{tpu_custom_call.1} parent=5 // pred_check_branch
        %150 = sbr.rel (%p148) target = $region20
      $region19: #{tpu_custom_call.1} parent=5 // pred_region
        // Predicated region
        $region21: #{tpu_custom_call.1} parent=19 // pred_check
          %p151 = pneg %p40
        $region22: #{tpu_custom_call.1} parent=19 // pred_check_branch
          %153 = sbr.rel (%p151) target = $region24
        $region23: #{tpu_custom_call.1} parent=19 // pred_region
          %s154 = sand.u32 %s30, 1
          %s155 = scalar_lea.sflag [#allocation3], %s154
          %s156 = sand.u32 %s30, 1
          %s157 = smul.addr %s156, 256
          %s158 = scalar_lea.vmem [#allocation2], %s157
          %s159 = smul.u32 32, %s20
          %s161 = ssub.s32 4096, 4096
          %162 = vsyncadd %s155, %s161
          %s163 = smul.addr %s159, 2
          %s164 = smul.addr %s163, 64
          %s165 = scalar_lea.hbm %s0, %s164
          %s166 = sshll.u32 %s158, 4
          %s167 = int_to_ptr.vmem [resolvable:$true] %s166
          %172 = dma.hbm_to_vmem [thread:$0]  %s165, 4096, %s167, %s155, 128, 128, 8
        $region24: #{tpu_custom_call.1} parent=19 // pred_fallthru
          _
      $region20: #{tpu_custom_call.1} parent=5 // pred_fallthru
        _
      %p173 = scmp.le.s32.totalorder 1, %s20
      %p174 = scmp.lt.s32.totalorder %s20, 3
      %p175 = pnand %p173, %p174
      %p176 = pneg %p175
      // Predicated region
      $region25: #{tpu_custom_call.1} parent=5 // pred_check
        _
      $region26: #{tpu_custom_call.1} parent=5 // pred_check_branch
        %178 = sbr.rel (%p175) target = $region28
      $region27: #{tpu_custom_call.1} parent=5 // pred_region
        %s179 = ssub.s32 %s20, 1
        %s180 = sand.u32 %s33, 1
        %s181 = scalar_lea.sflag [#allocation3], %s180
        %s182 = sand.u32 %s33, 1
        %s183 = smul.addr %s182, 256
        %s184 = scalar_lea.vmem [#allocation2], %s183
        // Predicated region
        $region29: #{tpu_custom_call.1} parent=27 // pred_check
          %p185 = pneg %p46
        $region30: #{tpu_custom_call.1} parent=27 // pred_check_branch
          %187 = sbr.rel (%p185) target = $region32
        $region31: #{tpu_custom_call.1} parent=27 // pred_region
          %188 = dma.done %s181, 4096
        $region32: #{tpu_custom_call.1} parent=27 // pred_fallthru
          _
        // Predicated region
        $region33: #{tpu_custom_call.1} parent=27 // pred_check
          %p189 = pneg %p67
        $region34: #{tpu_custom_call.1} parent=27 // pred_check_branch
          %191 = sbr.rel (%p189) target = $region36
        $region35: #{tpu_custom_call.1} parent=27 // pred_region
          %192 = dma.done [#allocation6], 2048
        $region36: #{tpu_custom_call.1} parent=27 // pred_fallthru
          _
        %s193 = sand.u32 %s33, 1
        %s194 = scalar_lea.sflag [#allocation3], %s193
        %s195 = sand.u32 %s33, 1
        %s196 = smul.addr %s195, 256
        %s197 = scalar_lea.vmem [#allocation2], %s196
        %p198 = pneg %p46
        %p199 = pneg %p43
        %p200 = pneg %p67
        %p201 = pneg %p64
        %p202 = pneg %p93
        %p203 = pneg %p90
        %s204 = sand.u32 %s80, 1
        %s205 = scalar_lea.sflag [#allocation4], %s204
        %s206 = sand.u32 %s80, 1
        %s207 = smul.addr %s206, 128
        %s208 = scalar_lea.vmem [#allocation7], %s207
        %p209 = pneg %p119
        %p210 = pneg %p116
        %s211 = sand.u32 %s106, 1
        %s212 = scalar_lea.sflag [#allocation9], %s211
        %s213 = sand.u32 %s106, 1
        %s214 = smul.addr %s213, 8
        %s215 = scalar_lea.vmem [#allocation8], %s214
        %s216 = smul.u32 32, %s25
        %s217 = smul.u32 32, %s25
        %v219 = vld [vmem:[%s184] sm:$0xff]
        %v220 = vld [vmem:[%s184 + $0x8] sm:$0xff]
        %v221 = vld [vmem:[%s184 + $0x10] sm:$0xff]
        %v222 = vld [vmem:[%s184 + $0x18] sm:$0xff]
        %v223 = vld [vmem:[%s184 + $0x20] sm:$0xff]
        %v224 = vld [vmem:[%s184 + $0x28] sm:$0xff]
        %v225 = vld [vmem:[%s184 + $0x30] sm:$0xff]
        %v226 = vld [vmem:[%s184 + $0x38] sm:$0xff]
        %v227 = vld [vmem:[%s184 + $0x40] sm:$0xff]
        %v228 = vld [vmem:[%s184 + $0x48] sm:$0xff]
        %v229 = vld [vmem:[%s184 + $0x50] sm:$0xff]
        %v230 = vld [vmem:[%s184 + $0x58] sm:$0xff]
        %v231 = vld [vmem:[%s184 + $0x60] sm:$0xff]
        %v232 = vld [vmem:[%s184 + $0x68] sm:$0xff]
        %v233 = vld [vmem:[%s184 + $0x70] sm:$0xff]
        %v234 = vld [vmem:[%s184 + $0x78] sm:$0xff]
        %v235 = vld [vmem:[%s184 + $0x80] sm:$0xff]
        %v236 = vld [vmem:[%s184 + $0x88] sm:$0xff]
        %v237 = vld [vmem:[%s184 + $0x90] sm:$0xff]
        %v238 = vld [vmem:[%s184 + $0x98] sm:$0xff]
        %v239 = vld [vmem:[%s184 + $0xa0] sm:$0xff]
        %v240 = vld [vmem:[%s184 + $0xa8] sm:$0xff]
        %v241 = vld [vmem:[%s184 + $0xb0] sm:$0xff]
        %v242 = vld [vmem:[%s184 + $0xb8] sm:$0xff]
        %v243 = vld [vmem:[%s184 + $0xc0] sm:$0xff]
        %v244 = vld [vmem:[%s184 + $0xc8] sm:$0xff]
        %v245 = vld [vmem:[%s184 + $0xd0] sm:$0xff]
        %v246 = vld [vmem:[%s184 + $0xd8] sm:$0xff]
        %v247 = vld [vmem:[%s184 + $0xe0] sm:$0xff]
        %v248 = vld [vmem:[%s184 + $0xe8] sm:$0xff]
        %v249 = vld [vmem:[%s184 + $0xf0] sm:$0xff]
        %v250 = vld [vmem:[%s184 + $0xf8] sm:$0xff]
        %v251 = vld [vmem:[#allocation5] sm:$0xf]
        %v252 = vld [vmem:[#allocation5 + $0x4] sm:$0xf]
        %v253 = vld [vmem:[#allocation5 + $0x8] sm:$0xf]
        %v254 = vld [vmem:[#allocation5 + $0xc] sm:$0xf]
        %v255 = vld [vmem:[#allocation5 + $0x10] sm:$0xf]
        %v256 = vld [vmem:[#allocation5 + $0x14] sm:$0xf]
        %v257 = vld [vmem:[#allocation5 + $0x18] sm:$0xf]
        %v258 = vld [vmem:[#allocation5 + $0x1c] sm:$0xf]
        %v259 = vld [vmem:[#allocation5 + $0x20] sm:$0xf]
        %v260 = vld [vmem:[#allocation5 + $0x24] sm:$0xf]
        %v261 = vld [vmem:[#allocation5 + $0x28] sm:$0xf]
        %v262 = vld [vmem:[#allocation5 + $0x2c] sm:$0xf]
        %v263 = vld [vmem:[#allocation5 + $0x30] sm:$0xf]
        %v264 = vld [vmem:[#allocation5 + $0x34] sm:$0xf]
        %v265 = vld [vmem:[#allocation5 + $0x38] sm:$0xf]
        %v266 = vld [vmem:[#allocation5 + $0x3c] sm:$0xf]
        %v267 = vld [vmem:[#allocation5 + $0x40] sm:$0xf]
        %v268 = vld [vmem:[#allocation5 + $0x44] sm:$0xf]
        %v269 = vld [vmem:[#allocation5 + $0x48] sm:$0xf]
        %v270 = vld [vmem:[#allocation5 + $0x4c] sm:$0xf]
        %v271 = vld [vmem:[#allocation5 + $0x50] sm:$0xf]
        %v272 = vld [vmem:[#allocation5 + $0x54] sm:$0xf]
        %v273 = vld [vmem:[#allocation5 + $0x58] sm:$0xf]
        %v274 = vld [vmem:[#allocation5 + $0x5c] sm:$0xf]
        %v275 = vld [vmem:[#allocation5 + $0x60] sm:$0xf]
        %v276 = vld [vmem:[#allocation5 + $0x64] sm:$0xf]
        %v277 = vld [vmem:[#allocation5 + $0x68] sm:$0xf]
        %v278 = vld [vmem:[#allocation5 + $0x6c] sm:$0xf]
        %v279 = vld [vmem:[#allocation5 + $0x70] sm:$0xf]
        %v280 = vld [vmem:[#allocation5 + $0x74] sm:$0xf]
        %v281 = vld [vmem:[#allocation5 + $0x78] sm:$0xf]
        %v282 = vld [vmem:[#allocation5 + $0x7c] sm:$0xf]
        %v315 = vunpack.c.l.b16 %v219
        %v316 = vunpack.c.h.b16 %v219
        %v317 = vunpack.c.l.b16 %v220
        %v318 = vunpack.c.h.b16 %v220
        %v319 = vunpack.c.l.b16 %v221
        %v320 = vunpack.c.h.b16 %v221
        %v321 = vunpack.c.l.b16 %v222
        %v322 = vunpack.c.h.b16 %v222
        %v323 = vunpack.c.l.b16 %v223
        %v324 = vunpack.c.h.b16 %v223
        %v325 = vunpack.c.l.b16 %v224
        %v326 = vunpack.c.h.b16 %v224
        %v327 = vunpack.c.l.b16 %v225
        %v328 = vunpack.c.h.b16 %v225
        %v329 = vunpack.c.l.b16 %v226
        %v330 = vunpack.c.h.b16 %v226
        %v331 = vunpack.c.l.b16 %v227
        %v332 = vunpack.c.h.b16 %v227
        %v333 = vunpack.c.l.b16 %v228
        %v334 = vunpack.c.h.b16 %v228
        %v335 = vunpack.c.l.b16 %v229
        %v336 = vunpack.c.h.b16 %v229
        %v337 = vunpack.c.l.b16 %v230
        %v338 = vunpack.c.h.b16 %v230
        %v339 = vunpack.c.l.b16 %v231
        %v340 = vunpack.c.h.b16 %v231
        %v341 = vunpack.c.l.b16 %v232
        %v342 = vunpack.c.h.b16 %v232
        %v343 = vunpack.c.l.b16 %v233
        %v344 = vunpack.c.h.b16 %v233
        %v345 = vunpack.c.l.b16 %v234
        %v346 = vunpack.c.h.b16 %v234
        %v347 = vunpack.c.l.b16 %v235
        %v348 = vunpack.c.h.b16 %v235
        %v349 = vunpack.c.l.b16 %v236
        %v350 = vunpack.c.h.b16 %v236
        %v351 = vunpack.c.l.b16 %v237
        %v352 = vunpack.c.h.b16 %v237
        %v353 = vunpack.c.l.b16 %v238
        %v354 = vunpack.c.h.b16 %v238
        %v355 = vunpack.c.l.b16 %v239
        %v356 = vunpack.c.h.b16 %v239
        %v357 = vunpack.c.l.b16 %v240
        %v358 = vunpack.c.h.b16 %v240
        %v359 = vunpack.c.l.b16 %v241
        %v360 = vunpack.c.h.b16 %v241
        %v361 = vunpack.c.l.b16 %v242
        %v362 = vunpack.c.h.b16 %v242
        %v363 = vunpack.c.l.b16 %v243
        %v364 = vunpack.c.h.b16 %v243
        %v365 = vunpack.c.l.b16 %v244
        %v366 = vunpack.c.h.b16 %v244
        %v367 = vunpack.c.l.b16 %v245
        %v368 = vunpack.c.h.b16 %v245
        %v369 = vunpack.c.l.b16 %v246
        %v370 = vunpack.c.h.b16 %v246
        %v371 = vunpack.c.l.b16 %v247
        %v372 = vunpack.c.h.b16 %v247
        %v373 = vunpack.c.l.b16 %v248
        %v374 = vunpack.c.h.b16 %v248
        %v375 = vunpack.c.l.b16 %v249
        %v376 = vunpack.c.h.b16 %v249
        %v377 = vunpack.c.l.b16 %v250
        %v378 = vunpack.c.h.b16 %v250
        %v379 = vpack.c.b16 %v317, %v315
        %v380 = vpack.c.b16 %v318, %v316
        %v381 = vpack.c.b16 %v321, %v319
        %v382 = vpack.c.b16 %v322, %v320
        %v383 = vpack.c.b16 %v325, %v323
        %v384 = vpack.c.b16 %v326, %v324
        %v385 = vpack.c.b16 %v329, %v327
        %v386 = vpack.c.b16 %v330, %v328
        %v387 = vpack.c.b16 %v333, %v331
        %v388 = vpack.c.b16 %v334, %v332
        %v389 = vpack.c.b16 %v337, %v335
        %v390 = vpack.c.b16 %v338, %v336
        %v391 = vpack.c.b16 %v341, %v339
        %v392 = vpack.c.b16 %v342, %v340
        %v393 = vpack.c.b16 %v345, %v343
        %v394 = vpack.c.b16 %v346, %v344
        %v395 = vpack.c.b16 %v349, %v347
        %v396 = vpack.c.b16 %v350, %v348
        %v397 = vpack.c.b16 %v353, %v351
        %v398 = vpack.c.b16 %v354, %v352
        %v399 = vpack.c.b16 %v357, %v355
        %v400 = vpack.c.b16 %v358, %v356
        %v401 = vpack.c.b16 %v361, %v359
        %v402 = vpack.c.b16 %v362, %v360
        %v403 = vpack.c.b16 %v365, %v363
        %v404 = vpack.c.b16 %v366, %v364
        %v405 = vpack.c.b16 %v369, %v367
        %v406 = vpack.c.b16 %v370, %v368
        %v407 = vpack.c.b16 %v373, %v371
        %v408 = vpack.c.b16 %v374, %v372
        %v409 = vpack.c.b16 %v377, %v375
        %v410 = vpack.c.b16 %v378, %v376
        %v475 = vunpack.c.l.b16 %v251
        %v476 = vunpack.c.l.b16 %v252
        %v477 = vunpack.c.l.b16 %v253
        %v478 = vunpack.c.l.b16 %v254
        %v479 = vunpack.c.l.b16 %v255
        %v480 = vunpack.c.l.b16 %v256
        %v481 = vunpack.c.l.b16 %v257
        %v482 = vunpack.c.l.b16 %v258
        %v483 = vunpack.c.l.b16 %v259
        %v484 = vunpack.c.l.b16 %v260
        %v485 = vunpack.c.l.b16 %v261
        %v486 = vunpack.c.l.b16 %v262
        %v487 = vunpack.c.l.b16 %v263
        %v488 = vunpack.c.l.b16 %v264
        %v489 = vunpack.c.l.b16 %v265
        %v490 = vunpack.c.l.b16 %v266
        %v491 = vunpack.c.l.b16 %v267
        %v492 = vunpack.c.l.b16 %v268
        %v493 = vunpack.c.l.b16 %v269
        %v494 = vunpack.c.l.b16 %v270
        %v495 = vunpack.c.l.b16 %v271
        %v496 = vunpack.c.l.b16 %v272
        %v497 = vunpack.c.l.b16 %v273
        %v498 = vunpack.c.l.b16 %v274
        %v499 = vunpack.c.l.b16 %v275
        %v500 = vunpack.c.l.b16 %v276
        %v501 = vunpack.c.l.b16 %v277
        %v502 = vunpack.c.l.b16 %v278
        %v503 = vunpack.c.l.b16 %v279
        %v504 = vunpack.c.l.b16 %v280
        %v505 = vunpack.c.l.b16 %v281
        %v506 = vunpack.c.l.b16 %v282
        %v507 = vpack.c.b16 %v476, %v475
        %v508 = vpack.c.b16 %v478, %v477
        %v509 = vpack.c.b16 %v480, %v479
        %v510 = vpack.c.b16 %v482, %v481
        %v511 = vpack.c.b16 %v484, %v483
        %v512 = vpack.c.b16 %v486, %v485
        %v513 = vpack.c.b16 %v488, %v487
        %v514 = vpack.c.b16 %v490, %v489
        %v515 = vpack.c.b16 %v492, %v491
        %v516 = vpack.c.b16 %v494, %v493
        %v517 = vpack.c.b16 %v496, %v495
        %v518 = vpack.c.b16 %v498, %v497
        %v519 = vpack.c.b16 %v500, %v499
        %v520 = vpack.c.b16 %v502, %v501
        %v521 = vpack.c.b16 %v504, %v503
        %v522 = vpack.c.b16 %v506, %v505
        %539 = vmatprep.subr.bf16.mxu0 0
        %540 = vmatpush1.bf16.msra.mxu0 %v507
        %541 = vmatprep.subr.bf16.mxu0 0
        %542 = vmatpush1.bf16.msra.mxu0 %v508
        %543 = vmatprep.subr.bf16.mxu0 0
        %544 = vmatpush1.bf16.msra.mxu0 %v509
        %545 = vmatprep.subr.bf16.mxu0 0
        %546 = vmatpush1.bf16.msra.mxu0 %v510
        %547 = vmatprep.subr.bf16.mxu0 0
        %548 = vmatpush1.bf16.msra.mxu0 %v511
        %549 = vmatprep.subr.bf16.mxu0 0
        %550 = vmatpush1.bf16.msra.mxu0 %v512
        %551 = vmatprep.subr.bf16.mxu0 0
        %552 = vmatpush1.bf16.msra.mxu0 %v513
        %553 = vmatprep.subr.bf16.mxu0 0
        %554 = vmatpush1.bf16.msra.mxu0 %v514
        %555 = vmatprep.subr.bf16.mxu0 0
        %556 = vmatpush1.bf16.msra.mxu0 %v515
        %557 = vmatprep.subr.bf16.mxu0 0
        %558 = vmatpush1.bf16.msra.mxu0 %v516
        %559 = vmatprep.subr.bf16.mxu0 0
        %560 = vmatpush1.bf16.msra.mxu0 %v517
        %561 = vmatprep.subr.bf16.mxu0 0
        %562 = vmatpush1.bf16.msra.mxu0 %v518
        %563 = vmatprep.subr.bf16.mxu0 0
        %564 = vmatpush1.bf16.msra.mxu0 %v519
        %565 = vmatprep.subr.bf16.mxu0 0
        %566 = vmatpush1.bf16.msra.mxu0 %v520
        %567 = vmatprep.subr.bf16.mxu0 0
        %568 = vmatpush1.bf16.msra.mxu0 %v521
        %569 = vmatprep.subr.bf16.mxu0 0
        %570 = vmatpush1.bf16.msra.mxu0 %v522
        %571 = vmatprep.mubr.bf16.mxu0 %v380
        %572 = vmatmul.mubr.bf16.gmra.mrb[0].mxu0 %v379
        %v573 = vpop.f32.mrb[0].mxu0
        %v574 = vadd.f32 0.0, %v573
        %v575 = vpop.f32.mrb[0].mxu0
        %v576 = vpop.f32.mrb[0].mxu0
        %v577 = vadd.f32 0.0, %v576
        %v578 = vpop.f32.mrb[0].mxu0
        %579 = vmatprep.mubr.bf16.mxu0 %v382
        %580 = vmatmul.mubr.bf16.gmra.mrb[0].mxu0 %v381
        %v581 = vpop.f32.mrb[0].mxu0
        %v582 = vadd.f32 0.0, %v581
        %v583 = vpop.f32.mrb[0].mxu0
        %v584 = vpop.f32.mrb[0].mxu0
        %v585 = vadd.f32 0.0, %v584
        %v586 = vpop.f32.mrb[0].mxu0
        %587 = vmatprep.mubr.bf16.mxu0 %v384
        %588 = vmatmul.mubr.bf16.gmra.mrb[0].mxu0 %v383
        %v589 = vpop.f32.mrb[0].mxu0
        %v590 = vadd.f32 0.0, %v589
        %v591 = vpop.f32.mrb[0].mxu0
        %v592 = vpop.f32.mrb[0].mxu0
        %v593 = vadd.f32 0.0, %v592
        %v594 = vpop.f32.mrb[0].mxu0
        %595 = vmatprep.mubr.bf16.mxu0 %v386
        %596 = vmatmul.mubr.bf16.gmra.mrb[0].mxu0 %v385
        %v597 = vpop.f32.mrb[0].mxu0
        %v598 = vadd.f32 0.0, %v597
        %v599 = vpop.f32.mrb[0].mxu0
        %v600 = vpop.f32.mrb[0].mxu0
        %v601 = vadd.f32 0.0, %v600
        %v602 = vpop.f32.mrb[0].mxu0
        %603 = vmatprep.mubr.bf16.mxu0 %v388
        %604 = vmatmul.mubr.bf16.gmra.mrb[0].mxu0 %v387
        %v605 = vpop.f32.mrb[0].mxu0
        %v606 = vadd.f32 0.0, %v605
        %v607 = vpop.f32.mrb[0].mxu0
        %v608 = vpop.f32.mrb[0].mxu0
        %v609 = vadd.f32 0.0, %v608
        %v610 = vpop.f32.mrb[0].mxu0
        %611 = vmatprep.mubr.bf16.mxu0 %v390
        %612 = vmatmul.mubr.bf16.gmra.mrb[0].mxu0 %v389
        %v613 = vpop.f32.mrb[0].mxu0
        %v614 = vadd.f32 0.0, %v613
        %v615 = vpop.f32.mrb[0].mxu0
        %v616 = vpop.f32.mrb[0].mxu0
        %v617 = vadd.f32 0.0, %v616
        %v618 = vpop.f32.mrb[0].mxu0
        %619 = vmatprep.mubr.bf16.mxu0 %v392
        %620 = vmatmul.mubr.bf16.gmra.mrb[0].mxu0 %v391
        %v621 = vpop.f32.mrb[0].mxu0
        %v622 = vadd.f32 0.0, %v621
        %v623 = vpop.f32.mrb[0].mxu0
        %v624 = vpop.f32.mrb[0].mxu0
        %v625 = vadd.f32 0.0, %v624
        %v626 = vpop.f32.mrb[0].mxu0
        %627 = vmatprep.mubr.bf16.mxu0 %v394
        %628 = vmatmul.mubr.bf16.gmra.mrb[0].mxu0 %v393
        %v629 = vpop.f32.mrb[0].mxu0
        %v630 = vadd.f32 0.0, %v629
        %v631 = vpop.f32.mrb[0].mxu0
        %v632 = vpop.f32.mrb[0].mxu0
        %v633 = vadd.f32 0.0, %v632
        %v634 = vpop.f32.mrb[0].mxu0
        %635 = vmatprep.mubr.bf16.mxu0 %v396
        %636 = vmatmul.mubr.bf16.gmra.mrb[0].mxu0 %v395
        %v637 = vpop.f32.mrb[0].mxu0
        %v638 = vadd.f32 0.0, %v637
        %v639 = vpop.f32.mrb[0].mxu0
        %v640 = vpop.f32.mrb[0].mxu0
        %v641 = vadd.f32 0.0, %v640
        %v642 = vpop.f32.mrb[0].mxu0
        %643 = vmatprep.mubr.bf16.mxu0 %v398
        %644 = vmatmul.mubr.bf16.gmra.mrb[0].mxu0 %v397
        %v645 = vpop.f32.mrb[0].mxu0
        %v646 = vadd.f32 0.0, %v645
        %v647 = vpop.f32.mrb[0].mxu0
        %v648 = vpop.f32.mrb[0].mxu0
        %v649 = vadd.f32 0.0, %v648
        %v650 = vpop.f32.mrb[0].mxu0
        %651 = vmatprep.mubr.bf16.mxu0 %v400
        %652 = vmatmul.mubr.bf16.gmra.mrb[0].mxu0 %v399
        %v653 = vpop.f32.mrb[0].mxu0
        %v654 = vadd.f32 0.0, %v653
        %v655 = vpop.f32.mrb[0].mxu0
        %v656 = vpop.f32.mrb[0].mxu0
        %v657 = vadd.f32 0.0, %v656
        %v658 = vpop.f32.mrb[0].mxu0
        %659 = vmatprep.mubr.bf16.mxu0 %v402
        %660 = vmatmul.mubr.bf16.gmra.mrb[0].mxu0 %v401
        %v661 = vpop.f32.mrb[0].mxu0
        %v662 = vadd.f32 0.0, %v661
        %v663 = vpop.f32.mrb[0].mxu0
        %v664 = vpop.f32.mrb[0].mxu0
        %v665 = vadd.f32 0.0, %v664
        %v666 = vpop.f32.mrb[0].mxu0
        %667 = vmatprep.mubr.bf16.mxu0 %v404
        %668 = vmatmul.mubr.bf16.gmra.mrb[0].mxu0 %v403
        %v669 = vpop.f32.mrb[0].mxu0
        %v670 = vadd.f32 0.0, %v669
        %v671 = vpop.f32.mrb[0].mxu0
        %v672 = vpop.f32.mrb[0].mxu0
        %v673 = vadd.f32 0.0, %v672
        %v674 = vpop.f32.mrb[0].mxu0
        %675 = vmatprep.mubr.bf16.mxu0 %v406
        %676 = vmatmul.mubr.bf16.gmra.mrb[0].mxu0 %v405
        %v677 = vpop.f32.mrb[0].mxu0
        %v678 = vadd.f32 0.0, %v677
        %v679 = vpop.f32.mrb[0].mxu0
        %v680 = vpop.f32.mrb[0].mxu0
        %v681 = vadd.f32 0.0, %v680
        %v682 = vpop.f32.mrb[0].mxu0
        %683 = vmatprep.mubr.bf16.mxu0 %v408
        %684 = vmatmul.mubr.bf16.gmra.mrb[0].mxu0 %v407
        %v685 = vpop.f32.mrb[0].mxu0
        %v686 = vadd.f32 0.0, %v685
        %v687 = vpop.f32.mrb[0].mxu0
        %v688 = vpop.f32.mrb[0].mxu0
        %v689 = vadd.f32 0.0, %v688
        %v690 = vpop.f32.mrb[0].mxu0
        %691 = vmatprep.mubr.bf16.mxu0 %v410
        %692 = vmatmul.mubr.bf16.gmra.mrb[0].mxu0 %v409
        %v693 = vpop.f32.mrb[0].mxu0
        %v694 = vadd.f32 0.0, %v693
        %v695 = vpop.f32.mrb[0].mxu0
        %v696 = vpop.f32.mrb[0].mxu0
        %v697 = vadd.f32 0.0, %v696
        %v698 = vpop.f32.mrb[0].mxu0
        %699 = vdwg.mxu0
        %v700 = vpack.c.bf16 %v577, %v574
        %v701 = vpack.c.bf16 %v585, %v582
        %v702 = vpack.c.bf16 %v593, %v590
        %v703 = vpack.c.bf16 %v601, %v598
        %v704 = vpack.c.bf16 %v609, %v606
        %v705 = vpack.c.bf16 %v617, %v614
        %v706 = vpack.c.bf16 %v625, %v622
        %v707 = vpack.c.bf16 %v633, %v630
        %v708 = vpack.c.bf16 %v641, %v638
        %v709 = vpack.c.bf16 %v649, %v646
        %v710 = vpack.c.bf16 %v657, %v654
        %v711 = vpack.c.bf16 %v665, %v662
        %v712 = vpack.c.bf16 %v673, %v670
        %v713 = vpack.c.bf16 %v681, %v678
        %v714 = vpack.c.bf16 %v689, %v686
        %v715 = vpack.c.bf16 %v697, %v694
        %v732 = vunpack.c.l.b16 %v700
        %v733 = vunpack.c.h.b16 %v700
        %v734 = vunpack.c.l.b16 %v701
        %v735 = vunpack.c.h.b16 %v701
        %v736 = vunpack.c.l.b16 %v702
        %v737 = vunpack.c.h.b16 %v702
        %v738 = vunpack.c.l.b16 %v703
        %v739 = vunpack.c.h.b16 %v703
        %v740 = vunpack.c.l.b16 %v704
        %v741 = vunpack.c.h.b16 %v704
        %v742 = vunpack.c.l.b16 %v705
        %v743 = vunpack.c.h.b16 %v705
        %v744 = vunpack.c.l.b16 %v706
        %v745 = vunpack.c.h.b16 %v706
        %v746 = vunpack.c.l.b16 %v707
        %v747 = vunpack.c.h.b16 %v707
        %v748 = vunpack.c.l.b16 %v708
        %v749 = vunpack.c.h.b16 %v708
        %v750 = vunpack.c.l.b16 %v709
        %v751 = vunpack.c.h.b16 %v709
        %v752 = vunpack.c.l.b16 %v710
        %v753 = vunpack.c.h.b16 %v710
        %v754 = vunpack.c.l.b16 %v711
        %v755 = vunpack.c.h.b16 %v711
        %v756 = vunpack.c.l.b16 %v712
        %v757 = vunpack.c.h.b16 %v712
        %v758 = vunpack.c.l.b16 %v713
        %v759 = vunpack.c.h.b16 %v713
        %v760 = vunpack.c.l.b16 %v714
        %v761 = vunpack.c.h.b16 %v714
        %v762 = vunpack.c.l.b16 %v715
        %v763 = vunpack.c.h.b16 %v715
        %v764 = vpack.c.b16 %v732, %v732
        %v765 = vpack.c.b16 %v733, %v733
        %v766 = vpack.c.b16 %v734, %v734
        %v767 = vpack.c.b16 %v735, %v735
        %v768 = vpack.c.b16 %v736, %v736
        %v769 = vpack.c.b16 %v737, %v737
        %v770 = vpack.c.b16 %v738, %v738
        %v771 = vpack.c.b16 %v739, %v739
        %v772 = vpack.c.b16 %v740, %v740
        %v773 = vpack.c.b16 %v741, %v741
        %v774 = vpack.c.b16 %v742, %v742
        %v775 = vpack.c.b16 %v743, %v743
        %v776 = vpack.c.b16 %v744, %v744
        %v777 = vpack.c.b16 %v745, %v745
        %v778 = vpack.c.b16 %v746, %v746
        %v779 = vpack.c.b16 %v747, %v747
        %v780 = vpack.c.b16 %v748, %v748
        %v781 = vpack.c.b16 %v749, %v749
        %v782 = vpack.c.b16 %v750, %v750
        %v783 = vpack.c.b16 %v751, %v751
        %v784 = vpack.c.b16 %v752, %v752
        %v785 = vpack.c.b16 %v753, %v753
        %v786 = vpack.c.b16 %v754, %v754
        %v787 = vpack.c.b16 %v755, %v755
        %v788 = vpack.c.b16 %v756, %v756
        %v789 = vpack.c.b16 %v757, %v757
        %v790 = vpack.c.b16 %v758, %v758
        %v791 = vpack.c.b16 %v759, %v759
        %v792 = vpack.c.b16 %v760, %v760
        %v793 = vpack.c.b16 %v761, %v761
        %v794 = vpack.c.b16 %v762, %v762
        %v795 = vpack.c.b16 %v763, %v763
        %828 = vst [vmem:[%s208] sm:$0xf] %v764
        %829 = vst [vmem:[%s208 + $0x4] sm:$0xf] %v765
        %830 = vst [vmem:[%s208 + $0x8] sm:$0xf] %v766
        %831 = vst [vmem:[%s208 + $0xc] sm:$0xf] %v767
        %832 = vst [vmem:[%s208 + $0x10] sm:$0xf] %v768
        %833 = vst [vmem:[%s208 + $0x14] sm:$0xf] %v769
        %834 = vst [vmem:[%s208 + $0x18] sm:$0xf] %v770
        %835 = vst [vmem:[%s208 + $0x1c] sm:$0xf] %v771
        %836 = vst [vmem:[%s208 + $0x20] sm:$0xf] %v772
        %837 = vst [vmem:[%s208 + $0x24] sm:$0xf] %v773
        %838 = vst [vmem:[%s208 + $0x28] sm:$0xf] %v774
        %839 = vst [vmem:[%s208 + $0x2c] sm:$0xf] %v775
        %840 = vst [vmem:[%s208 + $0x30] sm:$0xf] %v776
        %841 = vst [vmem:[%s208 + $0x34] sm:$0xf] %v777
        %842 = vst [vmem:[%s208 + $0x38] sm:$0xf] %v778
        %843 = vst [vmem:[%s208 + $0x3c] sm:$0xf] %v779
        %844 = vst [vmem:[%s208 + $0x40] sm:$0xf] %v780
        %845 = vst [vmem:[%s208 + $0x44] sm:$0xf] %v781
        %846 = vst [vmem:[%s208 + $0x48] sm:$0xf] %v782
        %847 = vst [vmem:[%s208 + $0x4c] sm:$0xf] %v783
        %848 = vst [vmem:[%s208 + $0x50] sm:$0xf] %v784
        %849 = vst [vmem:[%s208 + $0x54] sm:$0xf] %v785
        %850 = vst [vmem:[%s208 + $0x58] sm:$0xf] %v786
        %851 = vst [vmem:[%s208 + $0x5c] sm:$0xf] %v787
        %852 = vst [vmem:[%s208 + $0x60] sm:$0xf] %v788
        %853 = vst [vmem:[%s208 + $0x64] sm:$0xf] %v789
        %854 = vst [vmem:[%s208 + $0x68] sm:$0xf] %v790
        %855 = vst [vmem:[%s208 + $0x6c] sm:$0xf] %v791
        %856 = vst [vmem:[%s208 + $0x70] sm:$0xf] %v792
        %857 = vst [vmem:[%s208 + $0x74] sm:$0xf] %v793
        %858 = vst [vmem:[%s208 + $0x78] sm:$0xf] %v794
        %859 = vst [vmem:[%s208 + $0x7c] sm:$0xf] %v795
        %v860 = vadd.f32 %v574, %v577
        %v861 = vadd.f32 %v860, %v582
        %v862 = vadd.f32 %v861, %v585
        %v863 = vadd.f32 %v862, %v590
        %v864 = vadd.f32 %v863, %v593
        %v865 = vadd.f32 %v864, %v598
        %v866 = vadd.f32 %v865, %v601
        %v867 = vadd.f32 %v866, %v606
        %v868 = vadd.f32 %v867, %v609
        %v869 = vadd.f32 %v868, %v614
        %v870 = vadd.f32 %v869, %v617
        %v871 = vadd.f32 %v870, %v622
        %v872 = vadd.f32 %v871, %v625
        %v873 = vadd.f32 %v872, %v630
        %v874 = vadd.f32 %v873, %v633
        %v875 = vadd.f32 %v874, %v638
        %v876 = vadd.f32 %v875, %v641
        %v877 = vadd.f32 %v876, %v646
        %v878 = vadd.f32 %v877, %v649
        %v879 = vadd.f32 %v878, %v654
        %v880 = vadd.f32 %v879, %v657
        %v881 = vadd.f32 %v880, %v662
        %v882 = vadd.f32 %v881, %v665
        %v883 = vadd.f32 %v882, %v670
        %v884 = vadd.f32 %v883, %v673
        %v885 = vadd.f32 %v884, %v678
        %v886 = vadd.f32 %v885, %v681
        %v887 = vadd.f32 %v886, %v686
        %v888 = vadd.f32 %v887, %v689
        %v889 = vadd.f32 %v888, %v694
        %v890 = vadd.f32 %v889, %v697
        %v891 = vrot.slane %v890, 4
        %v892 = vadd.f32 %v890, %v891
        %v893 = vrot.slane %v892, 2
        %v894 = vadd.f32 %v892, %v893
        %v895 = vrot.slane %v894, 1
        %v896 = vadd.f32 %v894, %v895
        %v897 = vmul.f32 %v574, %v574
        %v898 = vmul.f32 %v577, %v577
        %v899 = vmul.f32 %v582, %v582
        %v900 = vmul.f32 %v585, %v585
        %v901 = vmul.f32 %v590, %v590
        %v902 = vmul.f32 %v593, %v593
        %v903 = vmul.f32 %v598, %v598
        %v904 = vmul.f32 %v601, %v601
        %v905 = vmul.f32 %v606, %v606
        %v906 = vmul.f32 %v609, %v609
        %v907 = vmul.f32 %v614, %v614
        %v908 = vmul.f32 %v617, %v617
        %v909 = vmul.f32 %v622, %v622
        %v910 = vmul.f32 %v625, %v625
        %v911 = vmul.f32 %v630, %v630
        %v912 = vmul.f32 %v633, %v633
        %v913 = vmul.f32 %v638, %v638
        %v914 = vmul.f32 %v641, %v641
        %v915 = vmul.f32 %v646, %v646
        %v916 = vmul.f32 %v649, %v649
        %v917 = vmul.f32 %v654, %v654
        %v918 = vmul.f32 %v657, %v657
        %v919 = vmul.f32 %v662, %v662
        %v920 = vmul.f32 %v665, %v665
        %v921 = vmul.f32 %v670, %v670
        %v922 = vmul.f32 %v673, %v673
        %v923 = vmul.f32 %v678, %v678
        %v924 = vmul.f32 %v681, %v681
        %v925 = vmul.f32 %v686, %v686
        %v926 = vmul.f32 %v689, %v689
        %v927 = vmul.f32 %v694, %v694
        %v928 = vmul.f32 %v697, %v697
        %v929 = vadd.f32 %v897, %v898
        %v930 = vadd.f32 %v929, %v899
        %v931 = vadd.f32 %v930, %v900
        %v932 = vadd.f32 %v931, %v901
        %v933 = vadd.f32 %v932, %v902
        %v934 = vadd.f32 %v933, %v903
        %v935 = vadd.f32 %v934, %v904
        %v936 = vadd.f32 %v935, %v905
        %v937 = vadd.f32 %v936, %v906
        %v938 = vadd.f32 %v937, %v907
        %v939 = vadd.f32 %v938, %v908
        %v940 = vadd.f32 %v939, %v909
        %v941 = vadd.f32 %v940, %v910
        %v942 = vadd.f32 %v941, %v911
        %v943 = vadd.f32 %v942, %v912
        %v944 = vadd.f32 %v943, %v913
        %v945 = vadd.f32 %v944, %v914
        %v946 = vadd.f32 %v945, %v915
        %v947 = vadd.f32 %v946, %v916
        %v948 = vadd.f32 %v947, %v917
        %v949 = vadd.f32 %v948, %v918
        %v950 = vadd.f32 %v949, %v919
        %v951 = vadd.f32 %v950, %v920
        %v952 = vadd.f32 %v951, %v921
        %v953 = vadd.f32 %v952, %v922
        %v954 = vadd.f32 %v953, %v923
        %v955 = vadd.f32 %v954, %v924
        %v956 = vadd.f32 %v955, %v925
        %v957 = vadd.f32 %v956, %v926
        %v958 = vadd.f32 %v957, %v927
        %v959 = vadd.f32 %v958, %v928
        %v960 = vrot.slane %v959, 4
        %v961 = vadd.f32 %v959, %v960
        %v962 = vrot.slane %v961, 2
        %v963 = vadd.f32 %v961, %v962
        %v964 = vrot.slane %v963, 1
        %v965 = vadd.f32 %v963, %v964
        %v966 = vlaneseq
        %v967 = vshrl.u32 %v966, 7
        %vm968 = vcmp.eq.s32.totalorder %v967, 0
        %vm969 = vcmp.eq.s32.totalorder %v967, 1
        %v970 = vsel %vm969, %v965, 0.0
        %v971 = vsel %vm968, %v896, %v970
        %972 = vst [vmem:[%s215] sm:$0xff] %v971
        %s973 = sand.u32 %s80, 1
        %s974 = scalar_lea.sflag [#allocation4], %s973
        %s975 = sand.u32 %s80, 1
        %s976 = smul.addr %s975, 128
        %s977 = scalar_lea.vmem [#allocation7], %s976
        %s978 = sand.u32 %s106, 1
        %s979 = scalar_lea.sflag [#allocation9], %s978
        %s980 = sand.u32 %s106, 1
        %s981 = smul.addr %s980, 8
        %s982 = scalar_lea.vmem [#allocation8], %s981
        // Predicated region
        $region37: #{tpu_custom_call.1} parent=27 // pred_check
          %p983 = pneg %p90
        $region38: #{tpu_custom_call.1} parent=27 // pred_check_branch
          %985 = sbr.rel (%p983) target = $region40
        $region39: #{tpu_custom_call.1} parent=27 // pred_region
          %s986 = smul.u32 32, %s25
          %s988 = ssub.s32 2048, 2048
          %989 = vsyncadd %s974, %s988
          %s990 = smul.addr %s986, 64
          %s991 = scalar_lea.hbm %s2, %s990
          %s992 = sshll.u32 %s977, 4
          %s993 = int_to_ptr.vmem [resolvable:$true] %s992
          %998 = dma.vmem_to_hbm [thread:$0]  %s993, 2048, %s991, %s974, 64, 64, 4
        $region40: #{tpu_custom_call.1} parent=27 // pred_fallthru
          _
        // Predicated region
        $region41: #{tpu_custom_call.1} parent=27 // pred_check
          %p999 = pneg %p116
        $region42: #{tpu_custom_call.1} parent=27 // pred_check_branch
          %1001 = sbr.rel (%p999) target = $region44
        $region43: #{tpu_custom_call.1} parent=27 // pred_region
          %s1003 = ssub.s32 128, 128
          %1004 = vsyncadd %s979, %s1003
          %s1005 = smul.addr %s25, 128
          %s1006 = scalar_lea.hbm %s3, %s1005
          %s1008 = sshll.u32 %s982, 4
          %s1009 = int_to_ptr.vmem [resolvable:$true] %s1008
          %1011 = dma.vmem_to_hbm [thread:$0]  %s1009, 128, %s1006, %s979
        $region44: #{tpu_custom_call.1} parent=27 // pred_fallthru
          _
      $region28: #{tpu_custom_call.1} parent=5 // pred_fallthru
        _
      %p1012 = scmp.le.s32.totalorder 2, %s20
      // Predicated region
      $region45: #{tpu_custom_call.1} parent=5 // pred_check
        %p1013 = pneg %p1012
      $region46: #{tpu_custom_call.1} parent=5 // pred_check_branch
        %1015 = sbr.rel (%p1013) target = $region48
      $region47: #{tpu_custom_call.1} parent=5 // pred_region
        %s1016 = ssub.s32 %s20, 2
        // Predicated region
        $region49: #{tpu_custom_call.1} parent=47 // pred_check
          %p1017 = pneg %p96
        $region50: #{tpu_custom_call.1} parent=47 // pred_check_branch
          %1019 = sbr.rel (%p1017) target = $region52
        $region51: #{tpu_custom_call.1} parent=47 // pred_region
          %s1020 = sand.u32 %s81, 1
          %s1021 = scalar_lea.sflag [#allocation4], %s1020
          %s1022 = sand.u32 %s81, 1
          %s1023 = smul.addr %s1022, 128
          %s1024 = scalar_lea.vmem [#allocation7], %s1023
          %1025 = dma.done %s1021, 2048
        $region52: #{tpu_custom_call.1} parent=47 // pred_fallthru
          _
        // Predicated region
        $region53: #{tpu_custom_call.1} parent=47 // pred_check
          %p1026 = pneg %p122
        $region54: #{tpu_custom_call.1} parent=47 // pred_check_branch
          %1028 = sbr.rel (%p1026) target = $region56
        $region55: #{tpu_custom_call.1} parent=47 // pred_region
          %s1029 = sand.u32 %s107, 1
          %s1030 = scalar_lea.sflag [#allocation9], %s1029
          %s1031 = sand.u32 %s107, 1
          %s1032 = smul.addr %s1031, 8
          %s1033 = scalar_lea.vmem [#allocation8], %s1032
          %1034 = dma.done %s1030, 128
        $region56: #{tpu_custom_call.1} parent=47 // pred_fallthru
          _
      $region48: #{tpu_custom_call.1} parent=5 // pred_fallthru
        _
    $region6: #{tpu_custom_call.1} parent=1 // loop_footer
      %s24 = sadd.s32 1, %s20
    $region7: #{tpu_custom_call.1} parent=1 // loop_footer_branch
      %19 = sbr.rel target = $region3
    $region8: #{tpu_custom_call.1} parent=1 // loop_exit
      _
    %1035 = vsyncpa [#allocation3], 1
    %s1036 = scalar_lea.sflag [#allocation3], 1
    %1037 = vsyncpa %s1036, 1
    %1038 = vsyncpa [#allocation6], 1
    %1039 = vsyncpa [#allocation4], 1
    %s1040 = scalar_lea.sflag [#allocation4], 1
    %1041 = vsyncpa %s1040, 1
    %1042 = vsyncpa [#allocation9], 1
    %s1043 = scalar_lea.sflag [#allocation9], 1
    %1044 = vsyncpa %s1043, 1

</llo_original>
